<compile_context>
chip_gen: v5e
topology: v5e:2x2
jax: 0.10.0
libtpu: 0.0.40
codegen_flags: <defaults>
</compile_context>

<pallas_src>
import math

import jax
import jax.numpy as jnp
from jax import lax
from jax.experimental import pallas as pl
from jax.experimental.pallas import tpu as pltpu

_INV_1P41421 = 1.0 / 1.41421  # reciprocal of the reference constant


def _gelu_erf(z):
    # z * 0.5 * (1 + erf(z / 1.41421)), divide replaced by a multiply.
    return z * (0.5 * (1.0 + lax.erf(z * _INV_1P41421)))


# --------------------------------------------------------------------------- #
# Kernels
# --------------------------------------------------------------------------- #
def _kernel_single_k(x_ref, w_ref, b_ref, o_ref):
    # x_ref: (tm, hidden)  w_ref: (hidden, tn)  b_ref: (1, tn) f32  o_ref: (tm, tn)
    z = jnp.dot(x_ref[...], w_ref[...], preferred_element_type=jnp.float32)
    z = z + b_ref[...].astype(jnp.float32)
    o_ref[...] = _gelu_erf(z).astype(o_ref.dtype)


def _make_kernel_multi_k(tk, x_resident):
    def kernel(x_ref, w_ref, b_ref, o_ref, acc_ref):
        # x_ref: (tm, hidden) if resident else (tm, tk)
        # w_ref: (tk, tn)   b_ref: (1, tn) f32   o_ref: (tm, tn)
        # acc_ref: (tm, tn) f32, resident across the K grid axis
        k = pl.program_id(2)

        @pl.when(k == 0)
        def _():
            acc_ref[...] = jnp.zeros_like(acc_ref)

        if x_resident:
            x_blk = x_ref[:, pl.ds(pl.multiple_of(k * tk, 128), tk)]
        else:
            x_blk = x_ref[...]

        acc_ref[...] += jnp.dot(
            x_blk, w_ref[...], preferred_element_type=jnp.float32
        )

        @pl.when(k == pl.num_programs(2) - 1)
        def _():
            z = acc_ref[...] + b_ref[...].astype(jnp.float32)
            o_ref[...] = _gelu_erf(z).astype(o_ref.dtype)

    return kernel


# --------------------------------------------------------------------------- #
# Parameter preparation (one-time, amortized over calls)
# --------------------------------------------------------------------------- #
def prepare_params(weight, bias, *, matmul_dtype=None):
    """Persist the weight transposed to (hidden, 4*hidden), optionally in bf16.

    weight : (out_features, hidden)  -- original PyTorch layout
    bias   : (out_features,)
    """
    w_t = jnp.asarray(weight).T  # (hidden, out_features)
    if matmul_dtype is not None:
        w_t = w_t.astype(matmul_dtype)
    return w_t, jnp.asarray(bias)


# --------------------------------------------------------------------------- #
# Forward wrapper
# --------------------------------------------------------------------------- #
def intermediate_forward(x, weight_t, bias, *, tm=256, tn=1024, tk=512):
    """y = gelu_erf(x @ weight_t + bias)

    x        : (..., hidden)
    weight_t : (hidden, out_features)  -- pre-transposed (see prepare_params);
               store it in bf16 for the bf16 MXU path.
    bias     : (out_features,)
    """
    hidden = x.shape[-1]
    assert weight_t.shape[0] == hidden, "weight_t must be (hidden, out_features)"
    out_features = weight_t.shape[1]
    lead = x.shape[:-1]
    M = int(math.prod(lead)) if lead else 1

    out_dtype = x.dtype
    x2d = x.reshape(M, hidden)
    if x2d.dtype != weight_t.dtype:
        # Only the (small) activation is cast per call; the weight is persisted.
        x2d = x2d.astype(weight_t.dtype)
    b2d = bias.reshape(1, out_features).astype(jnp.float32)

    # ---- tile sizing -------------------------------------------------------
    tm_eff = min(tm, M)
    tn_eff = min(tn, out_features)

    # K tiling: largest multiple of 128 that divides hidden and is <= tk
    # (keeps the accumulator pattern exact).  Otherwise single K step.
    tk_eff = hidden
    if hidden > tk:
        cand = (tk // 128) * 128
        while cand >= 128:
            if hidden % cand == 0:
                tk_eff = cand
                break
            cand -= 128
    num_k = hidden // tk_eff if hidden % tk_eff == 0 else 1
    if hidden % tk_eff != 0:
        tk_eff = hidden
        num_k = 1

    # ---- generation-aware VMEM budget --------------------------------------
    try:
        phys = int(pltpu.get_tpu_info().vmem_capacity_bytes)
        if phys <= 0:
            raise ValueError
    except Exception:
        phys = 64 * 1024 * 1024  # v7x-safe conservative default
    vmem_cap = int(phys * 0.8)

    in_item = jnp.dtype(x2d.dtype).itemsize
    out_item = jnp.dtype(out_dtype).itemsize

    def vmem_need(resident):
        x_cols = hidden if (resident or num_k == 1) else tk_eff
        need = 2 * tm_eff * x_cols * in_item          # x (double-buffered)
        need += 2 * tk_eff * tn_eff * in_item         # weight tiles
        need += 2 * tn_eff * 4                        # bias (f32)
        need += 2 * tm_eff * tn_eff * out_item        # output tiles
        if num_k > 1:
            need += tm_eff * tn_eff * 4               # f32 accumulator
        return need

    # Keep the x row-panel resident across N/K if it fits; otherwise stream it.
    x_resident = True
    if num_k > 1 and vmem_need(True) > vmem_cap:
        x_resident = False
    # Shrink N / M tiles if still over budget.
    while vmem_need(x_resident) > vmem_cap and tn_eff > 256:
        tn_eff = max(256, tn_eff // 2)
    while vmem_need(x_resident) > vmem_cap and tm_eff > 128:
        tm_eff = max(128, tm_eff // 2)

    need = vmem_need(x_resident)
    vmem_limit = int(min(max(2 * need, 32 * 1024 * 1024), vmem_cap))
    vmem_limit = max(vmem_limit, need + (1 << 20))

    grid_m = pl.cdiv(M, tm_eff)
    grid_n = pl.cdiv(out_features, tn_eff)

    # ---- specs / kernel selection ------------------------------------------
    if num_k == 1:
        grid = (grid_m, grid_n)
        in_specs = [
            pl.BlockSpec((tm_eff, hidden), lambda i, j: (i, 0)),   # x row panel
            pl.BlockSpec((hidden, tn_eff), lambda i, j: (0, j)),   # W^T tile
            pl.BlockSpec((1, tn_eff), lambda i, j: (0, j)),        # bias
        ]
        out_specs = pl.BlockSpec((tm_eff, tn_eff), lambda i, j: (i, j))
        scratch_shapes = []
        kernel = _kernel_single_k
        dims = ("parallel", "parallel")
    else:
        grid = (grid_m, grid_n, num_k)
        if x_resident:
            x_spec = pl.BlockSpec((tm_eff, hidden), lambda i, j, k: (i, 0))
        else:
            x_spec = pl.BlockSpec((tm_eff, tk_eff), lambda i, j, k: (i, k))
        in_specs = [
            x_spec,
            pl.BlockSpec((tk_eff, tn_eff), lambda i, j, k: (k, j)),  # W^T tile
            pl.BlockSpec((1, tn_eff), lambda i, j, k: (0, j)),       # bias
        ]
        out_specs = pl.BlockSpec((tm_eff, tn_eff), lambda i, j, k: (i, j))
        scratch_shapes = [pltpu.VMEM((tm_eff, tn_eff), jnp.float32)]
        kernel = _make_kernel_multi_k(tk_eff, x_resident)
        dims = ("parallel", "parallel", "arbitrary")

    out = pl.pallas_call(
        kernel,
        out_shape=jax.ShapeDtypeStruct((M, out_features), out_dtype),
        grid_spec=pltpu.PrefetchScalarGridSpec(
            num_scalar_prefetch=0,
            grid=grid,
            in_specs=in_specs,
            out_specs=out_specs,
            scratch_shapes=scratch_shapes,
        ),
        compiler_params=pltpu.CompilerParams(
            dimension_semantics=dims,
            vmem_limit_bytes=vmem_limit,
        ),
    )(x2d, weight_t, b2d)

    return out.reshape(*lead, out_features)


# --------------------------------------------------------------------------- #
# Reference + init (pure JAX)
# --------------------------------------------------------------------------- #
def init_params(key, hidden):
    """Deterministic emulation of kaiming_uniform_(a=sqrt(5)) + bias uniform."""
    out_features = 4 * hidden
    in_features = hidden
    kw, kb = jax.random.split(key)
    # kaiming_uniform with a=sqrt(5) -> bound = sqrt(6/((1+a^2)*fan_in)) = 1/sqrt(fan_in)
    w_bound = 1.0 / math.sqrt(in_features)
    weight = jax.random.uniform(
        kw, (out_features, in_features), jnp.float32, -w_bound, w_bound
    )
    b_bound = 1.0 / math.sqrt(in_features)
    bias = jax.random.uniform(kb, (out_features,), jnp.float32, -b_bound, b_bound)
    return weight, bias


def reference_forward(x, weight, bias):
    z = jnp.einsum("...h,oh->...o", x, weight) + bias
    return z * 0.5 * (1.0 + lax.erf(z / 1.41421))


if __name__ == "__main__":
    key = jax.random.PRNGKey(0)
    k_x, k_p = jax.random.split(key)

    batch, seq, hidden = 2, 8, 32  # small shapes consistent with the module
    x = jax.random.normal(k_x, (batch, seq, hidden), jnp.float32)
    weight, bias = init_params(k_p, hidden)

    ref = reference_forward(x, weight, bias)

    # --- f32 path (bit-tight vs reference) ---------------------------------
    w_t_f32, b_f32 = prepare_params(weight, bias)
    out_f32 = jax.block_until_ready(intermediate_forward(x, w_t_f32, b_f32))
    assert out_f32.shape == (batch, seq, 4 * hidden), out_f32.shape
    assert jnp.allclose(out_f32, ref, atol=1e-5, rtol=1e-5), "f32 mismatch"

    # --- bf16 MXU path (recommended production config: weights persisted bf16)
    w_t_bf16, b_bf16 = prepare_params(weight, bias, matmul_dtype=jnp.bfloat16)
    out_bf16 = jax.block_until_ready(intermediate_forward(x, w_t_bf16, b_bf16))
    assert out_bf16.shape == (batch, seq, 4 * hidden), out_bf16.shape
    assert jnp.allclose(out_bf16.astype(jnp.float32), ref, atol=3e-2, rtol=3e-2), \
        "bf16 mismatch"

    print("KERNEL_OK")
</pallas_src>

<mosaic_0001>
module attributes {stable_mosaic.version = 11 : i64} {
  func.func @_kernel_single_k(%arg0: i32, %arg1: i32, %arg2: memref<16x32xf32, #tpu.memory_space<vmem>>, %arg3: memref<32x128xf32, #tpu.memory_space<vmem>>, %arg4: memref<1x128xf32, #tpu.memory_space<vmem>>, %arg5: memref<16x128xf32, #tpu.memory_space<vmem>>) attributes {dimension_semantics = [#tpu.dimension_semantics<parallel>, #tpu.dimension_semantics<parallel>], iteration_bounds = array<i64: 1, 1>, scalar_prefetch = 0 : i64, scratch_operands = 0 : i64, tpu.core_type = #tpu.core_type<tc>, window_params = [{transform_indices = @transform_0, window_bounds = array<i64: 16, 32>}, {transform_indices = @transform_1, window_bounds = array<i64: 32, 128>}, {transform_indices = @transform_2, window_bounds = array<i64: 1, 128>}, {transform_indices = @transform_3, window_bounds = array<i64: 16, 128>}]} {
    %c0 = arith.constant 0 : index
    %c0_0 = arith.constant 0 : index
    %0 = vector.load %arg2[%c0, %c0_0] : memref<16x32xf32, #tpu.memory_space<vmem>>, vector<16x32xf32>
    %c0_1 = arith.constant 0 : index
    %c0_2 = arith.constant 0 : index
    %1 = vector.load %arg3[%c0_1, %c0_2] : memref<32x128xf32, #tpu.memory_space<vmem>>, vector<32x128xf32>
    %cst = arith.constant dense<0.000000e+00> : vector<16x128xf32>
    %2 = tpu.matmul %0, %1, %cst {dimension_numbers = #tpu.dot_dimension_numbers<[1], [0], [0], [1], [0, 0, 1, 1], [], []>} : vector<16x32xf32>, vector<32x128xf32>, vector<16x128xf32> -> vector<16x128xf32>
    %c0_3 = arith.constant 0 : index
    %c0_4 = arith.constant 0 : index
    %3 = vector.load %arg4[%c0_3, %c0_4] : memref<1x128xf32, #tpu.memory_space<vmem>>, vector<1x128xf32>
    %4 = vector.broadcast %3 : vector<1x128xf32> to vector<16x128xf32>
    %5 = arith.addf %2, %4 : vector<16x128xf32>
    %cst_5 = arith.constant 0.707108557 : f32
    %6 = vector.broadcast %cst_5 : f32 to vector<16x128xf32>
    %7 = arith.mulf %5, %6 : vector<16x128xf32>
    %8 = math.erf %7 : vector<16x128xf32>
    %cst_6 = arith.constant 1.000000e+00 : f32
    %9 = vector.broadcast %cst_6 : f32 to vector<16x128xf32>
    %10 = arith.addf %9, %8 : vector<16x128xf32>
    %cst_7 = arith.constant 5.000000e-01 : f32
    %11 = vector.broadcast %cst_7 : f32 to vector<16x128xf32>
    %12 = arith.mulf %11, %10 : vector<16x128xf32>
    %13 = arith.mulf %5, %12 : vector<16x128xf32>
    %c0_8 = arith.constant 0 : index
    %c0_9 = arith.constant 0 : index
    %14 = vector.load %arg5[%c0_8, %c0_9] : memref<16x128xf32, #tpu.memory_space<vmem>>, vector<16x128xf32>
    tpu.vector_store %arg5[%c0_8, %c0_9], %13 {strides = array<i32>} : memref<16x128xf32, #tpu.memory_space<vmem>>, vector<16x128xf32>,
    return
  }
  func.func @transform_0(%arg0: i32, %arg1: i32) -> (i32, i32) {
    %c0_i32 = arith.constant 0 : i32
    %c0_i32_0 = arith.constant 0 : i32
    return %arg0, %c0_i32 : i32, i32
  }
  func.func @transform_1(%arg0: i32, %arg1: i32) -> (i32, i32) {
    %c0_i32 = arith.constant 0 : i32
    %c0_i32_0 = arith.constant 0 : i32
    return %c0_i32, %arg1 : i32, i32
  }
  func.func @transform_2(%arg0: i32, %arg1: i32) -> (i32, i32) {
    %c0_i32 = arith.constant 0 : i32
    %c0_i32_0 = arith.constant 0 : i32
    return %c0_i32, %arg1 : i32, i32
  }
  func.func @transform_3(%arg0: i32, %arg1: i32) -> (i32, i32) {
    %c0_i32 = arith.constant 0 : i32
    return %arg0, %arg1 : i32, i32
  }
}

</mosaic_0001>

<llo_original>
// kernel: tpu_custom_call.1
$region0: #{tpu_custom_call.1}
  #allocation0 [shape = 'u32[]', space=smem, size = 0x4, offset = 0x4, fixed_abs, tag = 'smem constant byte address 0x4 - core index']
  #allocation1 [shape = 'u32[72,128]{1,0:T(1,128)}', space=vmem, size = 0x9000, scoped, tag = 'internal scratch']
  %s0 = inlined_call_operand.hbm [shape: f32[16,32], index: 0, kind: input, shape index: {}]
  %s1 = inlined_call_operand.hbm [shape: f32[32,128], index: 1, kind: input, shape index: {}]
  %s2 = inlined_call_operand.vmem [shape: f32[1,128], index: 2, kind: input, shape index: {}]
  %s3 = inlined_call_operand.hbm [shape: f32[16,128], index: 3, kind: output, shape index: {}]
  %s4 = sld [smem:[#allocation0]]
  $region30: #{tpu_custom_call.1} parent=0
    _
  %s6 = ssub.s32 1, %s4
  %s7 = scalar_select 0, %s6, %s4
  $region1: #{tpu_custom_call.1} parent=0
    #allocation2 [shape = 'u8[8192]{0}', space=vmem, size = 0x2000, scoped, tag = 'input window, operand 0, single buffered']
    #allocation3 [shape = 's32[1]{0}', space=sflag, size = 0x4, scoped, tag = 'scoped memory for tpu_custom_call.1']
    #allocation4 [shape = 's32[1]{0}', space=sflag, size = 0x4, scoped, tag = 'scoped memory for tpu_custom_call.1']
    #allocation5 [shape = 'u8[16384]{0}', space=vmem, size = 0x4000, scoped, tag = 'input window, operand 1, single buffered']
    #allocation6 [shape = 's32[1]{0}', space=sflag, size = 0x4, scoped, tag = 'scoped memory for tpu_custom_call.1']
    #allocation7 [shape = 'u8[8192]{0}', space=vmem, size = 0x2000, scoped, tag = 'output window, operand 0, single buffered']
    %8 = vsyncpa [#allocation3], 0
    %9 = vsyncpa [#allocation6], 0
    %10 = vsyncpa [#allocation4], 0
    // Predicated region
    $region2: #{tpu_custom_call.1} parent=1 // pred_check
      _
    $region3: #{tpu_custom_call.1} parent=1 // pred_check_branch
      %12 = sbr.rel (0) target = $region5
    $region4: #{tpu_custom_call.1} parent=1 // pred_region
      %14 = vsyncadd [#allocation3], 0
      %s15 = sshll.u32 %s0, 4
      %s16 = int_to_ptr.hbm [resolvable:$true] %s15
      %s17 = sshll.u32 [#allocation2], 4
      %s18 = int_to_ptr.vmem [resolvable:$true] %s17
      %23 = dma.hbm_to_vmem [thread:$0]  %s16, 256, %s18, [#allocation3], 128, 128, 8
    $region5: #{tpu_custom_call.1} parent=1 // pred_fallthru
      _
    // Predicated region
    $region6: #{tpu_custom_call.1} parent=1 // pred_check
      _
    $region7: #{tpu_custom_call.1} parent=1 // pred_check_branch
      %25 = sbr.rel (0) target = $region9
    $region8: #{tpu_custom_call.1} parent=1 // pred_region
      %27 = vsyncadd [#allocation6], 0
      %s28 = sshll.u32 %s1, 4
      %s29 = int_to_ptr.hbm [resolvable:$true] %s28
      %s30 = sshll.u32 [#allocation5], 4
      %s31 = int_to_ptr.vmem [resolvable:$true] %s30
      %36 = dma.hbm_to_vmem [thread:$0]  %s29, 512, %s31, [#allocation6], 128, 128, 8
    $region9: #{tpu_custom_call.1} parent=1 // pred_fallthru
      _
    // Predicated region
    $region10: #{tpu_custom_call.1} parent=1 // pred_check
      _
    $region11: #{tpu_custom_call.1} parent=1 // pred_check_branch
      %38 = sbr.rel (0) target = $region13
    $region12: #{tpu_custom_call.1} parent=1 // pred_region
      _
    $region13: #{tpu_custom_call.1} parent=1 // pred_fallthru
      _
    // Predicated region
    $region14: #{tpu_custom_call.1} parent=1 // pred_check
      _
    $region15: #{tpu_custom_call.1} parent=1 // pred_check_branch
      %40 = sbr.rel (0) target = $region17
    $region16: #{tpu_custom_call.1} parent=1 // pred_region
      %42 = dma.done [#allocation3], 256
    $region17: #{tpu_custom_call.1} parent=1 // pred_fallthru
      _
    // Predicated region
    $region18: #{tpu_custom_call.1} parent=1 // pred_check
      _
    $region19: #{tpu_custom_call.1} parent=1 // pred_check_branch
      %44 = sbr.rel (0) target = $region21
    $region20: #{tpu_custom_call.1} parent=1 // pred_region
      %46 = dma.done [#allocation6], 512
    $region21: #{tpu_custom_call.1} parent=1 // pred_fallthru
      _
    %v47 = vld [vmem:[#allocation2] sm:$0xff]
    %v48 = vld [vmem:[#allocation2 + $0x8] sm:$0xff]
    %v49 = vld [vmem:[#allocation5] sm:$0xff]
    %v50 = vld [vmem:[#allocation5 + $0x8] sm:$0xff]
    %v51 = vld [vmem:[#allocation5 + $0x10] sm:$0xff]
    %v52 = vld [vmem:[#allocation5 + $0x18] sm:$0xff]
    %v53 = vld [vmem:[%s2] sm:$0x1]
    %v55 = vperm.slane %v53, 0
    %vm57 = vcmask 261120
    %v59 = vsel %vm57, %v47, 0
    %v62 = vsel %vm57, %v48, 0
    %64 = vmatpush.msra.mxu0 0.0
    %65 = vmatpush.msra.mxu0 0.0
    %66 = vmatpush.msra.mxu0 0.0
    %67 = vmatpush.msra.mxu0 0.0
    %68 = vmatpush.msra.mxu0 0.0
    %69 = vmatpush.msra.mxu0 0.0
    %70 = vmatpush.msra.mxu0 0.0
    %71 = vmatpush.msra.mxu0 0.0
    %72 = vmatpush.msra.mxu0 0.0
    %73 = vmatpush.msra.mxu0 0.0
    %74 = vmatpush.msra.mxu0 0.0
    %75 = vmatpush.msra.mxu0 0.0
    %76 = vmatpush.msra.mxu0 %v52
    %77 = vmatpush.msra.mxu0 %v51
    %78 = vmatpush.msra.mxu0 %v50
    %79 = vmatpush.msra.mxu0 %v49
    %80 = vmatmul.f32.gmra.mxu0 %v59
    %v81 = vpop.f32.mrf.mxu0
    %v82 = vadd.f32 %v55, %v81
    %83 = vmatmul.f32.gmra.mxu0 %v62
    %v84 = vpop.f32.mrf.mxu0
    %v85 = vadd.f32 %v55, %v84
    %86 = vdwg.mxu0
    %v87 = vmul.f32 %v82, 0.70710856
    %v88 = vmul.f32 %v85, 0.70710856
    %v89 = vmul.f32 %v87, %v87
    %v90 = vmin.f32 16.0, %v89
    %v91 = vmul.f32 %v90, 2.1237322e-06
    %v92 = vadd.f32 %v91, 0.00028619796
    %v93 = vmul.f32 %v90, %v92
    %v94 = vadd.f32 %v93, 0.0036580483
    %v95 = vmul.f32 %v90, %v94
    %v96 = vadd.f32 %v95, 0.05243302
    %v97 = vmul.f32 %v90, %v96
    %v98 = vadd.f32 %v97, 0.18741608
    %v99 = vmul.f32 %v90, %v98
    %v100 = vadd.f32 %v99, 1.1283791
    %v101 = vmul.f32 %v87, %v100
    %v102 = vmul.f32 %v90, 3.8918573e-05
    %v103 = vadd.f32 %v102, 0.001143296
    %v104 = vmul.f32 %v90, %v103
    %v105 = vadd.f32 %v104, 0.014752088
    %v106 = vmul.f32 %v90, %v105
    %v107 = vadd.f32 %v106, 0.112945676
    %v108 = vmul.f32 %v90, %v107
    %v109 = vadd.f32 %v108, 0.4994258
    %v110 = vmul.f32 %v90, %v109
    %v111 = vadd.f32 %v110, 1.0
    %v112 = vrcp.pop %v111
    %v113 = vmul.f32 %v111, %v112
    %v114 = vsub.f32 1.0, %v113
    %v115 = vmul.f32 %v112, %v114
    %v116 = vadd.f32 %v112, %v115
    %vm117 = vweird.f32 %v111
    %vm118 = vweird.f32 %v112
    %vm119 = vmor %vm117, %vm118
    %v120 = vsel %vm119, %v112, %v116
    %v121 = vand.u32 2147483647, %v111
    %vm122 = vcmp.eq.f32.partialorder %v121, 8.507059e+37
    %v123 = vand.u32 %v111, 2147483648
    %v124 = vor.u32 1.1754944e-38, %v123
    %v125 = vsel %vm122, %v124, %v120
    %v126 = vmul.f32 %v101, %v125
    %v127 = vmin.f32 %v126, 1.0
    %v128 = vmax.f32 %v127, -1.0
    %v129 = vmul.f32 %v88, %v88
    %v130 = vmin.f32 16.0, %v129
    %v131 = vmul.f32 %v130, 2.1237322e-06
    %v132 = vadd.f32 %v131, 0.00028619796
    %v133 = vmul.f32 %v130, %v132
    %v134 = vadd.f32 %v133, 0.0036580483
    %v135 = vmul.f32 %v130, %v134
    %v136 = vadd.f32 %v135, 0.05243302
    %v137 = vmul.f32 %v130, %v136
    %v138 = vadd.f32 %v137, 0.18741608
    %v139 = vmul.f32 %v130, %v138
    %v140 = vadd.f32 %v139, 1.1283791
    %v141 = vmul.f32 %v88, %v140
    %v142 = vmul.f32 %v130, 3.8918573e-05
    %v143 = vadd.f32 %v142, 0.001143296
    %v144 = vmul.f32 %v130, %v143
    %v145 = vadd.f32 %v144, 0.014752088
    %v146 = vmul.f32 %v130, %v145
    %v147 = vadd.f32 %v146, 0.112945676
    %v148 = vmul.f32 %v130, %v147
    %v149 = vadd.f32 %v148, 0.4994258
    %v150 = vmul.f32 %v130, %v149
    %v151 = vadd.f32 %v150, 1.0
    %v152 = vrcp.pop %v151
    %v153 = vmul.f32 %v151, %v152
    %v154 = vsub.f32 1.0, %v153
    %v155 = vmul.f32 %v152, %v154
    %v156 = vadd.f32 %v152, %v155
    %vm157 = vweird.f32 %v151
    %vm158 = vweird.f32 %v152
    %vm159 = vmor %vm157, %vm158
    %v160 = vsel %vm159, %v152, %v156
    %v161 = vand.u32 2147483647, %v151
    %vm162 = vcmp.eq.f32.partialorder %v161, 8.507059e+37
    %v163 = vand.u32 %v151, 2147483648
    %v164 = vor.u32 1.1754944e-38, %v163
    %v165 = vsel %vm162, %v164, %v160
    %v166 = vmul.f32 %v141, %v165
    %v167 = vmin.f32 %v166, 1.0
    %v168 = vmax.f32 %v167, -1.0
    %v169 = vadd.f32 %v128, 1.0
    %v170 = vadd.f32 %v168, 1.0
    %v171 = vmul.f32 %v169, 0.5
    %v172 = vmul.f32 %v170, 0.5
    %v173 = vmul.f32 %v82, %v171
    %v174 = vmul.f32 %v85, %v172
    %175 = vst [vmem:[#allocation7] sm:$0xff] %v173
    %176 = vst [vmem:[#allocation7 + $0x8] sm:$0xff] %v174
    // Predicated region
    $region22: #{tpu_custom_call.1} parent=1 // pred_check
      _
    $region23: #{tpu_custom_call.1} parent=1 // pred_check_branch
      %178 = sbr.rel (0) target = $region25
    $region24: #{tpu_custom_call.1} parent=1 // pred_region
      %180 = vsyncadd [#allocation4], 0
      %s181 = sshll.u32 [#allocation7], 4
      %s182 = int_to_ptr.vmem [resolvable:$true] %s181
      %s183 = sshll.u32 %s3, 4
      %s184 = int_to_ptr.hbm [resolvable:$true] %s183
      %189 = dma.vmem_to_hbm [thread:$0]  %s182, 256, %s184, [#allocation4], 128, 128, 8
    $region25: #{tpu_custom_call.1} parent=1 // pred_fallthru
      _
    // Predicated region
    $region26: #{tpu_custom_call.1} parent=1 // pred_check
      _
    $region27: #{tpu_custom_call.1} parent=1 // pred_check_branch
      %191 = sbr.rel (0) target = $region29
    $region28: #{tpu_custom_call.1} parent=1 // pred_region
      %193 = dma.done [#allocation4], 256
    $region29: #{tpu_custom_call.1} parent=1 // pred_fallthru
      _
    %194 = vsyncpa [#allocation3], 1
    %195 = vsyncpa [#allocation6], 1
    %196 = vsyncpa [#allocation4], 1

</llo_original>
